<compile_context>
chip_gen: v7x
topology: tpu7x:2x2x1
jax: 0.10.0
libtpu: 0.0.40
codegen_flags: <defaults>
</compile_context>

<pallas_src>
import functools
import jax
import jax.numpy as jnp
from jax.experimental import pallas as pl
from jax.experimental.pallas import tpu as pltpu


def _default_bf16_activations():
    """bf16 VPU/EUP exists on v6e/v7x; keep activation math f32 on v5e and older."""
    try:
        kind = jax.devices()[0].device_kind.lower()
        return not any(tag in kind for tag in ("v2", "v3", "v4", "v5"))
    except Exception:
        return True


def _gated_conv_kernel(x_ref, skip_ref, w_ref, bfg_ref, ws_ref, bs_ref,
                       xr_ref, so_ref, stats_ref,
                       *, cd, ksize, dilation, t_out, bf16_act):
    """One batch row per grid step, full time axis per block.

    Fused filter+gate dilated conv (K accumulated bf16 MXU matmuls, f32 acc),
    gated activation, 1x1 skip conv, residual add, bf16 xr store, and per-batch
    f32 BN partial sums (sum, sum-of-squares).
    """
    # --- fused filter|gate dilated conv -----------------------------------
    acc = bfg_ref[...]                                       # [2Cd, 1] f32, broadcasts
    xs_last = None
    for k in range(ksize):
        # Static tap window of the (Cres, T) row block (x read from HBM only once).
        xs = x_ref[0, :, k * dilation:k * dilation + t_out]  # [Cres, t_out] f32
        acc = acc + jnp.dot(w_ref[k], xs.astype(jnp.bfloat16),
                            preferred_element_type=jnp.float32)
        xs_last = xs                                          # last tap == residual slice

    filt, gate = acc[:cd, :], acc[cd:, :]
    if bf16_act:  # v6e/v7x: ~2x EUP/VPU throughput; correct (just slower) elsewhere.
        filt = filt.astype(jnp.bfloat16)
        gate = gate.astype(jnp.bfloat16)
    xg = jnp.tanh(filt) * jax.nn.sigmoid(gate)                # [Cd, t_out]

    # --- 1x1 skip conv + aligned skip add (skip kept f32 for accuracy) ----
    s = jnp.dot(ws_ref[...], xg.astype(jnp.bfloat16),
                preferred_element_type=jnp.float32) + bs_ref[...]
    so_ref[0] = s + skip_ref[0]

    # --- residual add (f32) + bf16 store of xr -----------------------------
    xr = xg.astype(jnp.float32) + xs_last                     # [Cd, t_out] f32
    xr_ref[0] = xr.astype(jnp.bfloat16)

    # --- per-batch BN partial stats (f32, computed before the bf16 cast) ---
    # One tiny [Cres, 2] store per batch row -> negligible, off the hot path.
    stats_ref[0] = jnp.concatenate(
        [jnp.sum(xr, axis=1, keepdims=True),
         jnp.sum(xr * xr, axis=1, keepdims=True)], axis=1)    # [Cres, 2]


def _bn_apply_kernel(x_ref, scale_ref, shift_ref, o_ref):
    """o = xr * scale + shift, full-T block per batch row (scale/shift fold
    gamma, beta, mean, var)."""
    o_ref[0] = x_ref[0].astype(jnp.float32) * scale_ref[...] + shift_ref[...]


def nlayer_forward(x, skip, params, *, dilation=1, kernel_size=2, eps=1e-5,
                   bf16_activations=None):
    """x: [N, Cres, 1, T] (NCHW, F=1), skip: [N, Cskip, Ts].
    Returns ([N, Cres, 1, t_out], [N, Cskip, t_out]) with t_out = T - dilation*(K-1)."""
    N, Cres, F, T = x.shape
    assert F == 1, "NLayer.forward squeezes dim 2, so F must be 1"
    K, d = kernel_size, dilation
    Cd = params["wf"].shape[1]
    Cskip = params["ws"].shape[0]
    assert Cd == Cres, "residual add requires dilation_channels == residual_channels"
    t_out = T - d * (K - 1)
    assert t_out >= 1
    assert skip.shape[2] >= t_out
    if bf16_activations is None:
        bf16_activations = _default_bf16_activations()
    # TODO(synk): add a T-tiled path (grid over T with haloed x blocks) for sequences
    # too long to hold one (Cres, T) f32 row block in VMEM; unnecessary at these sizes.

    x2 = x[:, :, 0, :].astype(jnp.float32)                      # [N, Cres, T] f32
    skip_sl = skip[:, :, skip.shape[2] - t_out:].astype(jnp.float32)  # aligned with output

    # Fused per-tap filter|gate weight [K, 2*Cd, Cres] (rows = [filter; gate]).
    w_fg = jnp.concatenate([params["wf"], params["wg"]], axis=1).astype(jnp.bfloat16)
    b_fg = jnp.concatenate([params["bf"], params["bg"]], axis=0).astype(jnp.float32)
    ws = params["ws"].astype(jnp.bfloat16)
    bs = params["bs"].astype(jnp.float32)

    conv_kernel = functools.partial(
        _gated_conv_kernel, cd=Cd, ksize=K, dilation=d, t_out=t_out,
        bf16_act=bf16_activations)

    xr, skip_out, stats = pl.pallas_call(
        conv_kernel,
        out_shape=(
            jax.ShapeDtypeStruct((N, Cres, t_out), jnp.bfloat16),   # xr (bf16 intermediate)
            jax.ShapeDtypeStruct((N, Cskip, t_out), jnp.float32),   # skip_out (f32)
            jax.ShapeDtypeStruct((N, Cres, 2), jnp.float32),        # per-batch BN partials
        ),
        grid=(N,),
        in_specs=[
            pl.BlockSpec((1, Cres, T), lambda n: (n, 0, 0)),        # x row (read once)
            pl.BlockSpec((1, Cskip, t_out), lambda n: (n, 0, 0)),   # skip (pre-sliced)
            pl.BlockSpec((K, 2 * Cd, Cres), lambda n: (0, 0, 0)),   # fused filter|gate W
            pl.BlockSpec((2 * Cd, 1), lambda n: (0, 0)),            # filter|gate biases
            pl.BlockSpec((Cskip, Cd), lambda n: (0, 0)),            # skip-conv W
            pl.BlockSpec((Cskip, 1), lambda n: (0, 0)),             # skip-conv bias
        ],
        out_specs=(
            pl.BlockSpec((1, Cres, t_out), lambda n: (n, 0, 0)),
            pl.BlockSpec((1, Cskip, t_out), lambda n: (n, 0, 0)),
            pl.BlockSpec((1, Cres, 2), lambda n: (n, 0, 0)),
        ),
        compiler_params=pltpu.CompilerParams(
            dimension_semantics=("parallel",),                      # megacore over batch
            vmem_limit_bytes=32 * 1024 * 1024),
    )(x2, skip_sl, w_fg, b_fg, ws, bs)

    # Tiny reduction: fold per-batch sums + gamma/beta into per-channel scale/shift.
    sums = jnp.sum(stats, axis=0)                                   # [Cres, 2]
    count = jnp.float32(N * t_out)
    mean = sums[:, 0] / count
    var = jnp.maximum(sums[:, 1] / count - mean * mean, 0.0)        # biased var, clamped
    scale1 = params["gamma"][:, 0] * jax.lax.rsqrt(var + eps)
    shift1 = params["beta"][:, 0] - mean * scale1
    scale = scale1[:, None].astype(jnp.float32)                     # [Cres, 1]
    shift = shift1[:, None].astype(jnp.float32)

    x_bn = pl.pallas_call(
        _bn_apply_kernel,
        out_shape=jax.ShapeDtypeStruct((N, Cres, t_out), jnp.float32),
        grid=(N,),
        in_specs=[
            pl.BlockSpec((1, Cres, t_out), lambda n: (n, 0, 0)),
            pl.BlockSpec((Cres, 1), lambda n: (0, 0)),
            pl.BlockSpec((Cres, 1), lambda n: (0, 0)),
        ],
        out_specs=pl.BlockSpec((1, Cres, t_out), lambda n: (n, 0, 0)),
        compiler_params=pltpu.CompilerParams(
            dimension_semantics=("parallel",),
            vmem_limit_bytes=32 * 1024 * 1024),
    )(xr, scale, shift)

    return x_bn[:, :, None, :], skip_out


def ref_forward(x, skip, p, *, dilation, kernel_size, eps=1e-5):
    """Pure-JAX f32 reference mirroring the PyTorch forward."""
    N, C, F, T = x.shape
    x2 = x[:, :, 0, :]
    t_out = T - dilation * (kernel_size - 1)
    filt = jnp.zeros((N, p["wf"].shape[1], t_out)) + p["bf"][None]
    gate = jnp.zeros_like(filt) + p["bg"][None]
    for k in range(kernel_size):
        xs = x2[:, :, k * dilation: k * dilation + t_out]
        filt = filt + jnp.einsum("oc,nct->not", p["wf"][k], xs)
        gate = gate + jnp.einsum("oc,nct->not", p["wg"][k], xs)
    xg = jnp.tanh(filt) * jax.nn.sigmoid(gate)
    s = jnp.einsum("oc,nct->not", p["ws"], xg) + p["bs"][None]
    skip_out = s + skip[:, :, skip.shape[2] - t_out:]
    xr = xg + x2[:, :, T - t_out:]
    mean = xr.mean(axis=(0, 2), keepdims=True)
    var = ((xr - mean) ** 2).mean(axis=(0, 2), keepdims=True)
    x_bn = p["gamma"][None] * (xr - mean) / jnp.sqrt(var + eps) + p["beta"][None]
    return x_bn[:, :, None, :], skip_out


def _make_inputs(key, N, Cres, Cd, Cskip, K, T):
    keys = jax.random.split(key, 10)
    x = jax.random.normal(keys[0], (N, Cres, 1, T), jnp.float32)
    skip = jax.random.normal(keys[1], (N, Cskip, T), jnp.float32)
    params = dict(
        wf=0.1 * jax.random.normal(keys[2], (K, Cd, Cres), jnp.float32),
        bf=0.1 * jax.random.normal(keys[3], (Cd, 1), jnp.float32),
        wg=0.1 * jax.random.normal(keys[4], (K, Cd, Cres), jnp.float32),
        bg=0.1 * jax.random.normal(keys[5], (Cd, 1), jnp.float32),
        ws=0.1 * jax.random.normal(keys[6], (Cskip, Cd), jnp.float32),
        bs=0.1 * jax.random.normal(keys[7], (Cskip, 1), jnp.float32),
        gamma=1.0 + 0.1 * jax.random.normal(keys[8], (Cres, 1), jnp.float32),
        beta=0.1 * jax.random.normal(keys[9], (Cres, 1), jnp.float32),
    )
    return x, skip, params


if __name__ == "__main__":
    key_a, key_b = jax.random.split(jax.random.PRNGKey(0))
    # bf16 matmul operands / activations with f32 accumulation -> loosened tolerance.
    ATOL = RTOL = 5e-2

    # Config A: dilation 1, T = 129 -> t_out = 128 (lane-dense full-T block).
    N, Cres, Cd, Cskip, K, d, T = 2, 32, 32, 64, 2, 1, 129
    xA, skipA, pA = _make_inputs(key_a, N, Cres, Cd, Cskip, K, T)
    outA, skA = nlayer_forward(xA, skipA, pA, dilation=d, kernel_size=K)
    jax.block_until_ready((outA, skA))
    refA, refsA = ref_forward(xA, skipA, pA, dilation=d, kernel_size=K)
    t_out = T - d * (K - 1)
    assert outA.shape == (N, Cres, 1, t_out)
    assert skA.shape == (N, Cskip, t_out)
    assert jnp.allclose(outA, refA, atol=ATOL, rtol=RTOL)
    assert jnp.allclose(skA, refsA, atol=ATOL, rtol=RTOL)

    # Config B: dilation 2, T = 200 -> t_out = 196 (not a multiple of 128; blocks
    # use the full array dims, so no ragged handling is needed anywhere).
    N, Cres, Cd, Cskip, K, d, T = 2, 32, 32, 64, 2, 2, 200
    xB, skipB, pB = _make_inputs(key_b, N, Cres, Cd, Cskip, K, T)
    outB, skB = nlayer_forward(xB, skipB, pB, dilation=d, kernel_size=K)
    jax.block_until_ready((outB, skB))
    refB, refsB = ref_forward(xB, skipB, pB, dilation=d, kernel_size=K)
    t_out = T - d * (K - 1)
    assert outB.shape == (N, Cres, 1, t_out)
    assert skB.shape == (N, Cskip, t_out)
    assert jnp.allclose(outB, refB, atol=ATOL, rtol=RTOL)
    assert jnp.allclose(skB, refsB, atol=ATOL, rtol=RTOL)

    print("KERNEL_OK")
</pallas_src>

<mosaic_0001>
module attributes {stable_mosaic.version = 11 : i64} {
  func.func @_gated_conv_kernel(%arg0: i32, %arg1: memref<1x32x129xf32, #tpu.memory_space<vmem>>, %arg2: memref<1x64x128xf32, #tpu.memory_space<vmem>>, %arg3: memref<2x64x32xbf16, #tpu.memory_space<vmem>>, %arg4: memref<64x1xf32, #tpu.memory_space<vmem>>, %arg5: memref<64x32xbf16, #tpu.memory_space<vmem>>, %arg6: memref<64x1xf32, #tpu.memory_space<vmem>>, %arg7: memref<1x32x128xbf16, #tpu.memory_space<vmem>>, %arg8: memref<1x64x128xf32, #tpu.memory_space<vmem>>, %arg9: memref<1x32x2xf32, #tpu.memory_space<vmem>>) attributes {dimension_semantics = [#tpu.dimension_semantics<parallel>], iteration_bounds = array<i64: 2>, scalar_prefetch = 0 : i64, scratch_operands = 0 : i64, tpu.core_type = #tpu.core_type<tc>, window_params = [{transform_indices = @transform_0, window_bounds = array<i64: 1, 32, 129>}, {transform_indices = @transform_1, window_bounds = array<i64: 1, 64, 128>}, {pipeline_mode = #tpu.pipeline_mode<synchronous>, transform_indices = @transform_2, window_bounds = array<i64: 2, 64, 32>}, {pipeline_mode = #tpu.pipeline_mode<synchronous>, transform_indices = @transform_3, window_bounds = array<i64: 64, 1>}, {pipeline_mode = #tpu.pipeline_mode<synchronous>, transform_indices = @transform_4, window_bounds = array<i64: 64, 32>}, {pipeline_mode = #tpu.pipeline_mode<synchronous>, transform_indices = @transform_5, window_bounds = array<i64: 64, 1>}, {transform_indices = @transform_6, window_bounds = array<i64: 1, 32, 128>}, {transform_indices = @transform_7, window_bounds = array<i64: 1, 64, 128>}, {transform_indices = @transform_8, window_bounds = array<i64: 1, 32, 2>}]} {
    %c0 = arith.constant 0 : index
    %c0_0 = arith.constant 0 : index
    %0 = vector.load %arg4[%c0, %c0_0] : memref<64x1xf32, #tpu.memory_space<vmem>>, vector<64x1xf32>
    %c0_1 = arith.constant 0 : index
    %c0_2 = arith.constant 0 : index
    %c0_3 = arith.constant 0 : index
    %1 = vector.load %arg1[%c0_1, %c0_2, %c0_3] : memref<1x32x129xf32, #tpu.memory_space<vmem>>, vector<1x32x128xf32>
    %2 = vector.shape_cast %1 : vector<1x32x128xf32> to vector<32x128xf32>
    %c0_4 = arith.constant 0 : index
    %c0_5 = arith.constant 0 : index
    %c0_6 = arith.constant 0 : index
    %3 = vector.load %arg3[%c0_4, %c0_5, %c0_6] : memref<2x64x32xbf16, #tpu.memory_space<vmem>>, vector<1x64x32xbf16>
    %4 = vector.shape_cast %3 : vector<1x64x32xbf16> to vector<64x32xbf16>
    %5 = arith.truncf %2 : vector<32x128xf32> to vector<32x128xbf16>
    %cst = arith.constant dense<0.000000e+00> : vector<64x128xf32>
    %6 = tpu.matmul %4, %5, %cst {dimension_numbers = #tpu.dot_dimension_numbers<[1], [0], [0], [1], [0, 0, 1, 1], [], []>} : vector<64x32xbf16>, vector<32x128xbf16>, vector<64x128xf32> -> vector<64x128xf32>
    %7 = vector.broadcast %0 : vector<64x1xf32> to vector<64x128xf32>
    %8 = arith.addf %7, %6 : vector<64x128xf32>
    %c0_7 = arith.constant 0 : index
    %c0_8 = arith.constant 0 : index
    %c1 = arith.constant 1 : index
    %9 = vector.load %arg1[%c0_7, %c0_8, %c1] : memref<1x32x129xf32, #tpu.memory_space<vmem>>, vector<1x32x128xf32>
    %10 = vector.shape_cast %9 : vector<1x32x128xf32> to vector<32x128xf32>
    %c1_9 = arith.constant 1 : index
    %c0_10 = arith.constant 0 : index
    %c0_11 = arith.constant 0 : index
    %11 = vector.load %arg3[%c1_9, %c0_10, %c0_11] : memref<2x64x32xbf16, #tpu.memory_space<vmem>>, vector<1x64x32xbf16>
    %12 = vector.shape_cast %11 : vector<1x64x32xbf16> to vector<64x32xbf16>
    %13 = arith.truncf %10 : vector<32x128xf32> to vector<32x128xbf16>
    %cst_12 = arith.constant dense<0.000000e+00> : vector<64x128xf32>
    %14 = tpu.matmul %12, %13, %cst_12 {dimension_numbers = #tpu.dot_dimension_numbers<[1], [0], [0], [1], [0, 0, 1, 1], [], []>} : vector<64x32xbf16>, vector<32x128xbf16>, vector<64x128xf32> -> vector<64x128xf32>
    %15 = arith.addf %8, %14 : vector<64x128xf32>
    %16 = vector.extract_strided_slice %15 {offsets = [0, 0], sizes = [32, 128], strides = [1, 1]} : vector<64x128xf32> to vector<32x128xf32>
    %17 = vector.extract_strided_slice %15 {offsets = [32, 0], sizes = [32, 128], strides = [1, 1]} : vector<64x128xf32> to vector<32x128xf32>
    %18 = arith.truncf %16 : vector<32x128xf32> to vector<32x128xbf16>
    %19 = arith.truncf %17 : vector<32x128xf32> to vector<32x128xbf16>
    %20 = math.tanh %18 : vector<32x128xbf16>
    %21 = arith.negf %19 : vector<32x128xbf16>
    %22 = math.exp %21 : vector<32x128xbf16>
    %cst_13 = arith.constant 1.000000e+00 : bf16
    %23 = vector.broadcast %cst_13 : bf16 to vector<32x128xbf16>
    %24 = arith.addf %23, %22 : vector<32x128xbf16>
    %25 = arith.divf %23, %24 : vector<32x128xbf16>
    %26 = arith.mulf %20, %25 : vector<32x128xbf16>
    %c0_14 = arith.constant 0 : index
    %c0_15 = arith.constant 0 : index
    %27 = vector.load %arg5[%c0_14, %c0_15] : memref<64x32xbf16, #tpu.memory_space<vmem>>, vector<64x32xbf16>
    %cst_16 = arith.constant dense<0.000000e+00> : vector<64x128xf32>
    %28 = tpu.matmul %27, %26, %cst_16 {dimension_numbers = #tpu.dot_dimension_numbers<[1], [0], [0], [1], [0, 0, 1, 1], [], []>} : vector<64x32xbf16>, vector<32x128xbf16>, vector<64x128xf32> -> vector<64x128xf32>
    %c0_17 = arith.constant 0 : index
    %c0_18 = arith.constant 0 : index
    %29 = vector.load %arg6[%c0_17, %c0_18] : memref<64x1xf32, #tpu.memory_space<vmem>>, vector<64x1xf32>
    %30 = vector.broadcast %29 : vector<64x1xf32> to vector<64x128xf32>
    %31 = arith.addf %28, %30 : vector<64x128xf32>
    %c0_19 = arith.constant 0 : index
    %c0_20 = arith.constant 0 : index
    %c0_21 = arith.constant 0 : index
    %32 = vector.load %arg2[%c0_19, %c0_20, %c0_21] : memref<1x64x128xf32, #tpu.memory_space<vmem>>, vector<1x64x128xf32>
    %33 = vector.shape_cast %32 : vector<1x64x128xf32> to vector<64x128xf32>
    %34 = arith.addf %31, %33 : vector<64x128xf32>
    %c0_22 = arith.constant 0 : index
    %c0_23 = arith.constant 0 : index
    %c0_24 = arith.constant 0 : index
    %35 = vector.load %arg8[%c0_22, %c0_23, %c0_24] : memref<1x64x128xf32, #tpu.memory_space<vmem>>, vector<1x64x128xf32>
    %36 = vector.shape_cast %35 : vector<1x64x128xf32> to vector<64x128xf32>
    %37 = vector.shape_cast %34 : vector<64x128xf32> to vector<1x64x128xf32>
    tpu.vector_store %arg8[%c0_22, %c0_23, %c0_24], %37 {strides = array<i32>} : memref<1x64x128xf32, #tpu.memory_space<vmem>>, vector<1x64x128xf32>,
    %38 = arith.extf %26 : vector<32x128xbf16> to vector<32x128xf32>
    %39 = arith.addf %38, %10 : vector<32x128xf32>
    %40 = arith.truncf %39 : vector<32x128xf32> to vector<32x128xbf16>
    %c0_25 = arith.constant 0 : index
    %c0_26 = arith.constant 0 : index
    %c0_27 = arith.constant 0 : index
    %41 = vector.load %arg7[%c0_25, %c0_26, %c0_27] : memref<1x32x128xbf16, #tpu.memory_space<vmem>>, vector<1x32x128xbf16>
    %42 = vector.shape_cast %41 : vector<1x32x128xbf16> to vector<32x128xbf16>
    %43 = vector.shape_cast %40 : vector<32x128xbf16> to vector<1x32x128xbf16>
    tpu.vector_store %arg7[%c0_25, %c0_26, %c0_27], %43 {strides = array<i32>} : memref<1x32x128xbf16, #tpu.memory_space<vmem>>, vector<1x32x128xbf16>,
    %cst_28 = arith.constant dense<0.000000e+00> : vector<32xf32>
    %44 = vector.multi_reduction <add>, %39, %cst_28 [1] : vector<32x128xf32> to vector<32xf32>
    %45 = vector.shape_cast %44 : vector<32xf32> to vector<32x1xf32>
    %46 = arith.mulf %39, %39 : vector<32x128xf32>
    %cst_29 = arith.constant dense<0.000000e+00> : vector<32xf32>
    %47 = vector.multi_reduction <add>, %46, %cst_29 [1] : vector<32x128xf32> to vector<32xf32>
    %48 = vector.shape_cast %47 : vector<32xf32> to vector<32x1xf32>
    %49 = tpu.concatenate %45, %48 in 1 : vector<32x1xf32>, vector<32x1xf32> -> vector<32x2xf32>
    %c0_30 = arith.constant 0 : index
    %c0_31 = arith.constant 0 : index
    %c0_32 = arith.constant 0 : index
    %50 = vector.load %arg9[%c0_30, %c0_31, %c0_32] : memref<1x32x2xf32, #tpu.memory_space<vmem>>, vector<1x32x2xf32>
    %51 = vector.shape_cast %50 : vector<1x32x2xf32> to vector<32x2xf32>
    %52 = vector.shape_cast %49 : vector<32x2xf32> to vector<1x32x2xf32>
    tpu.vector_store %arg9[%c0_30, %c0_31, %c0_32], %52 {strides = array<i32>} : memref<1x32x2xf32, #tpu.memory_space<vmem>>, vector<1x32x2xf32>,
    return
  }
  func.func @transform_0(%arg0: i32) -> (i32, i32, i32) {
    %c0_i32 = arith.constant 0 : i32
    %c0_i32_0 = arith.constant 0 : i32
    %c0_i32_1 = arith.constant 0 : i32
    return %arg0, %c0_i32, %c0_i32_0 : i32, i32, i32
  }
  func.func @transform_1(%arg0: i32) -> (i32, i32, i32) {
    %c0_i32 = arith.constant 0 : i32
    %c0_i32_0 = arith.constant 0 : i32
    %c0_i32_1 = arith.constant 0 : i32
    return %arg0, %c0_i32, %c0_i32_0 : i32, i32, i32
  }
  func.func @transform_2(%arg0: i32) -> (i32, i32, i32) {
    %c0_i32 = arith.constant 0 : i32
    %c0_i32_0 = arith.constant 0 : i32
    %c0_i32_1 = arith.constant 0 : i32
    %c0_i32_2 = arith.constant 0 : i32
    return %c0_i32, %c0_i32_0, %c0_i32_1 : i32, i32, i32
  }
  func.func @transform_3(%arg0: i32) -> (i32, i32) {
    %c0_i32 = arith.constant 0 : i32
    %c0_i32_0 = arith.constant 0 : i32
    %c0_i32_1 = arith.constant 0 : i32
    return %c0_i32, %c0_i32_0 : i32, i32
  }
  func.func @transform_4(%arg0: i32) -> (i32, i32) {
    %c0_i32 = arith.constant 0 : i32
    %c0_i32_0 = arith.constant 0 : i32
    %c0_i32_1 = arith.constant 0 : i32
    return %c0_i32, %c0_i32_0 : i32, i32
  }
  func.func @transform_5(%arg0: i32) -> (i32, i32) {
    %c0_i32 = arith.constant 0 : i32
    %c0_i32_0 = arith.constant 0 : i32
    %c0_i32_1 = arith.constant 0 : i32
    return %c0_i32, %c0_i32_0 : i32, i32
  }
  func.func @transform_6(%arg0: i32) -> (i32, i32, i32) {
    %c0_i32 = arith.constant 0 : i32
    %c0_i32_0 = arith.constant 0 : i32
    %c0_i32_1 = arith.constant 0 : i32
    return %arg0, %c0_i32, %c0_i32_0 : i32, i32, i32
  }
  func.func @transform_7(%arg0: i32) -> (i32, i32, i32) {
    %c0_i32 = arith.constant 0 : i32
    %c0_i32_0 = arith.constant 0 : i32
    %c0_i32_1 = arith.constant 0 : i32
    return %arg0, %c0_i32, %c0_i32_0 : i32, i32, i32
  }
  func.func @transform_8(%arg0: i32) -> (i32, i32, i32) {
    %c0_i32 = arith.constant 0 : i32
    %c0_i32_0 = arith.constant 0 : i32
    %c0_i32_1 = arith.constant 0 : i32
    return %arg0, %c0_i32, %c0_i32_0 : i32, i32, i32
  }
}

</mosaic_0001>

<llo_original>
// kernel: tpu_custom_call.1
$region0: #{tpu_custom_call.1}
  #allocation0 [shape = 'u32[]', space=smem, size = 0x4, offset = 0x4, fixed_abs, tag = 'smem constant byte address 0x4 - core index']
  #allocation1 [shape = 'u32[144,128]{1,0:T(1,128)}', space=vmem, size = 0x12000, scoped, tag = 'internal scratch']
  %s0 = inlined_call_operand.vmem [shape: f32[2,32,129], index: 0, kind: input, shape index: {}]
  %s1 = inlined_call_operand.vmem [shape: f32[2,64,128], index: 1, kind: input, shape index: {}]
  %s2 = inlined_call_operand.vmem [shape: bf16[2,64,32], index: 2, kind: input, shape index: {}]
  %s3 = inlined_call_operand.vmem [shape: f32[64,1], index: 3, kind: input, shape index: {}]
  %s4 = inlined_call_operand.vmem [shape: bf16[64,32], index: 4, kind: input, shape index: {}]
  %s5 = inlined_call_operand.vmem [shape: f32[64,1], index: 5, kind: input, shape index: {}]
  %s6 = inlined_call_operand.hbm [shape: bf16[2,32,128], index: 6, kind: output, shape index: {0}]
  %s7 = inlined_call_operand.hbm [shape: f32[2,64,128], index: 7, kind: output, shape index: {1}]
  %s8 = inlined_call_operand.vmem [shape: f32[2,32,2], index: 8, kind: output, shape index: {2}]
  %9 = xla_tuple %s6, %s7, %s8
  %s10 = sld [smem:[#allocation0]]
  $region73: #{tpu_custom_call.1} parent=0
    _
  %s12 = ssub.s32 1, %s10
  %s13 = scalar_select 0, %s12, %s10
  $region1: #{tpu_custom_call.1} parent=0
    #allocation2 [shape = 'u8[16384]{0}', space=vmem, size = 0x4000, scoped, tag = 'output window, operand 0']
    #allocation3 [shape = 's32[2]{0}', space=sflag, size = 0x8, scoped, tag = 'scoped memory for tpu_custom_call.1']
    #allocation4 [shape = 'u8[65536]{0}', space=vmem, size = 0x10000, scoped, tag = 'output window, operand 1']
    #allocation5 [shape = 's32[2]{0}', space=sflag, size = 0x8, scoped, tag = 'scoped memory for tpu_custom_call.1']
    %14 = vsyncpa [#allocation3], 0
    %s15 = scalar_lea.sflag [#allocation3], 1
    %16 = vsyncpa %s15, 0
    %17 = vsyncpa [#allocation5], 0
    %s18 = scalar_lea.sflag [#allocation5], 1
    %19 = vsyncpa %s18, 0
    loop: start=0, step=1, limit=4
    $region2: #{tpu_custom_call.1} parent=1 // loop_pre_header
      _
    $region3: #{tpu_custom_call.1} parent=1 // loop_header
      %s21 = sphi 0, %s25
      %p22 = scmp.ge.s32.totalorder %s21, 4
      %s31 = sphi 0, %s33
      %s34 = sphi 0, %s31
      %s35 = sphi 0, %s34
      %s51 = sphi 0, %s35
      %s57 = sphi 0, %s59
      %s60 = sphi 0, %s57
      %s61 = sphi 0, %s60
      %s77 = sphi 0, %s61
      %s81 = sphi 0, %s81
      %s83 = sphi 0, %s81
      %s84 = sphi 0, %s83
      %s98 = sphi 0, %s84
      %s102 = sphi 0, %s102
      %s104 = sphi 0, %s102
      %s105 = sphi 0, %s104
      %s119 = sphi 0, %s105
      %s123 = sphi 0, %s123
      %s125 = sphi 0, %s123
      %s126 = sphi 0, %s125
      %s140 = sphi 0, %s126
      %s144 = sphi 0, %s144
      %s146 = sphi 0, %s144
      %s147 = sphi 0, %s146
      %s161 = sphi 0, %s147
      %s167 = sphi 0, %s169
      %s170 = sphi 0, %s167
      %s171 = sphi 0, %s170
      %s187 = sphi 0, %s171
      %s193 = sphi 0, %s195
      %s196 = sphi 0, %s193
      %s197 = sphi 0, %s196
      %s213 = sphi 0, %s197
      %s219 = sphi 0, %s221
      %s222 = sphi 0, %s219
      %s223 = sphi 0, %s222
      %s239 = sphi 0, %s223
    $region4: #{tpu_custom_call.1} parent=1 // loop_header_branch
      %24 = sbr.rel (%p22) target = $region8
    $region5: #{tpu_custom_call.1} parent=1 // loop_body
      %s26 = ssub.s32 %s21, 1
      %s27 = ssub.s32 %s21, 2
      %s28 = sadd.s32 %s21, 1
      %s29 = ssub.s32 %s21, %s28
      %p30 = scmp.eq.s32.totalorder %s29, 0
      %s32 = sadd.s32 %s31, 1
      %s33 = scalar_select %p30, %s31, %s32
      %p36 = pneg %p30
      %p37 = scmp.eq.s32.totalorder %s21, 1
      %p38 = por %p36, %p37
      %p39 = scmp.ne.s32.totalorder %s31, %s34
      %p40 = scmp.eq.s32.totalorder %s21, 0
      %p41 = por %p39, %p40
      %p42 = scmp.ne.s32.totalorder %s31, %s34
      %p43 = scmp.eq.s32.totalorder %s26, 1
      %p44 = por %p42, %p43
      %p45 = scmp.ne.s32.totalorder %s34, %s35
      %p46 = scmp.eq.s32.totalorder %s26, 0
      %p47 = por %p45, %p46
      %p48 = scmp.ne.s32.totalorder %s34, %s35
      %p49 = scmp.eq.s32.totalorder %s27, 1
      %p50 = por %p48, %p49
      %p52 = scmp.ne.s32.totalorder %s35, %s51
      %p53 = scmp.eq.s32.totalorder %s27, 0
      %p54 = por %p52, %p53
      %s55 = ssub.s32 %s21, %s28
      %p56 = scmp.eq.s32.totalorder %s55, 0
      %s58 = sadd.s32 %s57, 1
      %s59 = scalar_select %p56, %s57, %s58
      %p62 = pneg %p56
      %p63 = scmp.eq.s32.totalorder %s21, 1
      %p64 = por %p62, %p63
      %p65 = scmp.ne.s32.totalorder %s57, %s60
      %p66 = scmp.eq.s32.totalorder %s21, 0
      %p67 = por %p65, %p66
      %p68 = scmp.ne.s32.totalorder %s57, %s60
      %p69 = scmp.eq.s32.totalorder %s26, 1
      %p70 = por %p68, %p69
      %p71 = scmp.ne.s32.totalorder %s60, %s61
      %p72 = scmp.eq.s32.totalorder %s26, 0
      %p73 = por %p71, %p72
      %p74 = scmp.ne.s32.totalorder %s60, %s61
      %p75 = scmp.eq.s32.totalorder %s27, 1
      %p76 = por %p74, %p75
      %p78 = scmp.ne.s32.totalorder %s61, %s77
      %p79 = scmp.eq.s32.totalorder %s27, 0
      %p80 = por %p78, %p79
      %s82 = sadd.s32 %s81, 1
      %p85 = scmp.eq.s32.totalorder %s21, 1
      %p86 = scmp.ne.s32.totalorder %s81, %s83
      %p87 = scmp.eq.s32.totalorder %s21, 0
      %p88 = por %p86, %p87
      %p89 = scmp.ne.s32.totalorder %s81, %s83
      %p90 = scmp.eq.s32.totalorder %s26, 1
      %p91 = por %p89, %p90
      %p92 = scmp.ne.s32.totalorder %s83, %s84
      %p93 = scmp.eq.s32.totalorder %s26, 0
      %p94 = por %p92, %p93
      %p95 = scmp.ne.s32.totalorder %s83, %s84
      %p96 = scmp.eq.s32.totalorder %s27, 1
      %p97 = por %p95, %p96
      %p99 = scmp.ne.s32.totalorder %s84, %s98
      %p100 = scmp.eq.s32.totalorder %s27, 0
      %p101 = por %p99, %p100
      %s103 = sadd.s32 %s102, 1
      %p106 = scmp.eq.s32.totalorder %s21, 1
      %p107 = scmp.ne.s32.totalorder %s102, %s104
      %p108 = scmp.eq.s32.totalorder %s21, 0
      %p109 = por %p107, %p108
      %p110 = scmp.ne.s32.totalorder %s102, %s104
      %p111 = scmp.eq.s32.totalorder %s26, 1
      %p112 = por %p110, %p111
      %p113 = scmp.ne.s32.totalorder %s104, %s105
      %p114 = scmp.eq.s32.totalorder %s26, 0
      %p115 = por %p113, %p114
      %p116 = scmp.ne.s32.totalorder %s104, %s105
      %p117 = scmp.eq.s32.totalorder %s27, 1
      %p118 = por %p116, %p117
      %p120 = scmp.ne.s32.totalorder %s105, %s119
      %p121 = scmp.eq.s32.totalorder %s27, 0
      %p122 = por %p120, %p121
      %s124 = sadd.s32 %s123, 1
      %p127 = scmp.eq.s32.totalorder %s21, 1
      %p128 = scmp.ne.s32.totalorder %s123, %s125
      %p129 = scmp.eq.s32.totalorder %s21, 0
      %p130 = por %p128, %p129
      %p131 = scmp.ne.s32.totalorder %s123, %s125
      %p132 = scmp.eq.s32.totalorder %s26, 1
      %p133 = por %p131, %p132
      %p134 = scmp.ne.s32.totalorder %s125, %s126
      %p135 = scmp.eq.s32.totalorder %s26, 0
      %p136 = por %p134, %p135
      %p137 = scmp.ne.s32.totalorder %s125, %s126
      %p138 = scmp.eq.s32.totalorder %s27, 1
      %p139 = por %p137, %p138
      %p141 = scmp.ne.s32.totalorder %s126, %s140
      %p142 = scmp.eq.s32.totalorder %s27, 0
      %p143 = por %p141, %p142
      %s145 = sadd.s32 %s144, 1
      %p148 = scmp.eq.s32.totalorder %s21, 1
      %p149 = scmp.ne.s32.totalorder %s144, %s146
      %p150 = scmp.eq.s32.totalorder %s21, 0
      %p151 = por %p149, %p150
      %p152 = scmp.ne.s32.totalorder %s144, %s146
      %p153 = scmp.eq.s32.totalorder %s26, 1
      %p154 = por %p152, %p153
      %p155 = scmp.ne.s32.totalorder %s146, %s147
      %p156 = scmp.eq.s32.totalorder %s26, 0
      %p157 = por %p155, %p156
      %p158 = scmp.ne.s32.totalorder %s146, %s147
      %p159 = scmp.eq.s32.totalorder %s27, 1
      %p160 = por %p158, %p159
      %p162 = scmp.ne.s32.totalorder %s147, %s161
      %p163 = scmp.eq.s32.totalorder %s27, 0
      %p164 = por %p162, %p163
      %s165 = ssub.s32 %s21, %s28
      %p166 = scmp.eq.s32.totalorder %s165, 0
      %s168 = sadd.s32 %s167, 1
      %s169 = scalar_select %p166, %s167, %s168
      %p172 = pneg %p166
      %p173 = scmp.eq.s32.totalorder %s21, 1
      %p174 = por %p172, %p173
      %p175 = scmp.ne.s32.totalorder %s167, %s170
      %p176 = scmp.eq.s32.totalorder %s21, 0
      %p177 = por %p175, %p176
      %p178 = scmp.ne.s32.totalorder %s167, %s170
      %p179 = scmp.eq.s32.totalorder %s26, 1
      %p180 = por %p178, %p179
      %p181 = scmp.ne.s32.totalorder %s170, %s171
      %p182 = scmp.eq.s32.totalorder %s26, 0
      %p183 = por %p181, %p182
      %p184 = scmp.ne.s32.totalorder %s170, %s171
      %p185 = scmp.eq.s32.totalorder %s27, 1
      %p186 = por %p184, %p185
      %p188 = scmp.ne.s32.totalorder %s171, %s187
      %p189 = scmp.eq.s32.totalorder %s27, 0
      %p190 = por %p188, %p189
      %s191 = ssub.s32 %s21, %s28
      %p192 = scmp.eq.s32.totalorder %s191, 0
      %s194 = sadd.s32 %s193, 1
      %s195 = scalar_select %p192, %s193, %s194
      %p198 = pneg %p192
      %p199 = scmp.eq.s32.totalorder %s21, 1
      %p200 = por %p198, %p199
      %p201 = scmp.ne.s32.totalorder %s193, %s196
      %p202 = scmp.eq.s32.totalorder %s21, 0
      %p203 = por %p201, %p202
      %p204 = scmp.ne.s32.totalorder %s193, %s196
      %p205 = scmp.eq.s32.totalorder %s26, 1
      %p206 = por %p204, %p205
      %p207 = scmp.ne.s32.totalorder %s196, %s197
      %p208 = scmp.eq.s32.totalorder %s26, 0
      %p209 = por %p207, %p208
      %p210 = scmp.ne.s32.totalorder %s196, %s197
      %p211 = scmp.eq.s32.totalorder %s27, 1
      %p212 = por %p210, %p211
      %p214 = scmp.ne.s32.totalorder %s197, %s213
      %p215 = scmp.eq.s32.totalorder %s27, 0
      %p216 = por %p214, %p215
      %s217 = ssub.s32 %s21, %s28
      %p218 = scmp.eq.s32.totalorder %s217, 0
      %s220 = sadd.s32 %s219, 1
      %s221 = scalar_select %p218, %s219, %s220
      %p224 = pneg %p218
      %p225 = scmp.eq.s32.totalorder %s21, 1
      %p226 = por %p224, %p225
      %p227 = scmp.ne.s32.totalorder %s219, %s222
      %p228 = scmp.eq.s32.totalorder %s21, 0
      %p229 = por %p227, %p228
      %p230 = scmp.ne.s32.totalorder %s219, %s222
      %p231 = scmp.eq.s32.totalorder %s26, 1
      %p232 = por %p230, %p231
      %p233 = scmp.ne.s32.totalorder %s222, %s223
      %p234 = scmp.eq.s32.totalorder %s26, 0
      %p235 = por %p233, %p234
      %p236 = scmp.ne.s32.totalorder %s222, %s223
      %p237 = scmp.eq.s32.totalorder %s27, 1
      %p238 = por %p236, %p237
      %p240 = scmp.ne.s32.totalorder %s223, %s239
      %p241 = scmp.eq.s32.totalorder %s27, 0
      %p242 = por %p240, %p241
      %p243 = scmp.le.s32.totalorder 1, %s21
      %p244 = scmp.lt.s32.totalorder %s21, 3
      %p245 = pnand %p243, %p244
      %p246 = pneg %p245
      // Predicated region
      $region9: #{tpu_custom_call.1} parent=5 // pred_check
        _
      $region10: #{tpu_custom_call.1} parent=5 // pred_check_branch
        %248 = sbr.rel (%p245) target = $region12
      $region11: #{tpu_custom_call.1} parent=5 // pred_region
        %s249 = ssub.s32 %s21, 1
        // Predicated region
        $region13: #{tpu_custom_call.1} parent=11 // pred_check
          %p250 = pneg %p94
        $region14: #{tpu_custom_call.1} parent=11 // pred_check_branch
          %252 = sbr.rel (%p250) target = $region16
        $region15: #{tpu_custom_call.1} parent=11 // pred_region
          _
        $region16: #{tpu_custom_call.1} parent=11 // pred_fallthru
          _
        // Predicated region
        $region17: #{tpu_custom_call.1} parent=11 // pred_check
          %p253 = pneg %p115
        $region18: #{tpu_custom_call.1} parent=11 // pred_check_branch
          %255 = sbr.rel (%p253) target = $region20
        $region19: #{tpu_custom_call.1} parent=11 // pred_region
          _
        $region20: #{tpu_custom_call.1} parent=11 // pred_fallthru
          _
        // Predicated region
        $region21: #{tpu_custom_call.1} parent=11 // pred_check
          %p256 = pneg %p136
        $region22: #{tpu_custom_call.1} parent=11 // pred_check_branch
          %258 = sbr.rel (%p256) target = $region24
        $region23: #{tpu_custom_call.1} parent=11 // pred_region
          _
        $region24: #{tpu_custom_call.1} parent=11 // pred_fallthru
          _
        // Predicated region
        $region25: #{tpu_custom_call.1} parent=11 // pred_check
          %p259 = pneg %p157
        $region26: #{tpu_custom_call.1} parent=11 // pred_check_branch
          %261 = sbr.rel (%p259) target = $region28
        $region27: #{tpu_custom_call.1} parent=11 // pred_region
          _
        $region28: #{tpu_custom_call.1} parent=11 // pred_fallthru
          _
      $region12: #{tpu_custom_call.1} parent=5 // pred_fallthru
        _
      %p262 = scmp.lt.s32.totalorder %s21, 2
      // Predicated region
      $region29: #{tpu_custom_call.1} parent=5 // pred_check
        %p263 = pneg %p262
      $region30: #{tpu_custom_call.1} parent=5 // pred_check_branch
        %265 = sbr.rel (%p263) target = $region32
      $region31: #{tpu_custom_call.1} parent=5 // pred_region
        // Predicated region
        $region33: #{tpu_custom_call.1} parent=31 // pred_check
          %p266 = pneg %p41
        $region34: #{tpu_custom_call.1} parent=31 // pred_check_branch
          %268 = sbr.rel (%p266) target = $region36
        $region35: #{tpu_custom_call.1} parent=31 // pred_region
          %p269 = scmp.lt.s32.totalorder %s21, 1
          %s270 = scalar_select %p269, %s21, 1
          %s271 = smul.addr %s270, 8
          %s272 = smul.addr %s271, 8
          %s273 = scalar_lea.vmem %s0, %s272
        $region36: #{tpu_custom_call.1} parent=31 // pred_fallthru
          _
        // Predicated region
        $region37: #{tpu_custom_call.1} parent=31 // pred_check
          %p274 = pneg %p67
        $region38: #{tpu_custom_call.1} parent=31 // pred_check_branch
          %276 = sbr.rel (%p274) target = $region40
        $region39: #{tpu_custom_call.1} parent=31 // pred_region
          %p277 = scmp.lt.s32.totalorder %s21, 1
          %s278 = scalar_select %p277, %s21, 1
          %s279 = smul.addr %s278, 8
          %s280 = smul.addr %s279, 8
          %s281 = scalar_lea.vmem %s1, %s280
        $region40: #{tpu_custom_call.1} parent=31 // pred_fallthru
          _
      $region32: #{tpu_custom_call.1} parent=5 // pred_fallthru
        _
      %p282 = scmp.le.s32.totalorder 1, %s21
      %p283 = scmp.lt.s32.totalorder %s21, 3
      %p284 = pnand %p282, %p283
      %p285 = pneg %p284
      // Predicated region
      $region41: #{tpu_custom_call.1} parent=5 // pred_check
        _
      $region42: #{tpu_custom_call.1} parent=5 // pred_check_branch
        %287 = sbr.rel (%p284) target = $region44
      $region43: #{tpu_custom_call.1} parent=5 // pred_region
        %s288 = ssub.s32 %s21, 1
        %p289 = scmp.lt.s32.totalorder %s26, 1
        %s290 = scalar_select %p289, %s26, 1
        %s291 = smul.addr %s290, 8
        %s292 = smul.addr %s291, 8
        %s293 = scalar_lea.vmem %s0, %s292
        %p294 = pneg %p47
        %p295 = pneg %p44
        %p296 = scmp.lt.s32.totalorder %s26, 1
        %s297 = scalar_select %p296, %s26, 1
        %s298 = smul.addr %s297, 8
        %s299 = smul.addr %s298, 8
        %s300 = scalar_lea.vmem %s1, %s299
        %p301 = pneg %p73
        %p302 = pneg %p70
        %p303 = pneg %p94
        %p304 = pneg %p91
        %p305 = pneg %p115
        %p306 = pneg %p112
        %p307 = pneg %p136
        %p308 = pneg %p133
        %p309 = pneg %p157
        %p310 = pneg %p154
        %p311 = pneg %p183
        %p312 = pneg %p180
        %s313 = sand.u32 %s170, 1
        %s314 = scalar_lea.sflag [#allocation3], %s313
        %s315 = sand.u32 %s170, 1
        %s316 = smul.addr %s315, 16
        %s317 = scalar_lea.vmem [#allocation2], %s316
        %p318 = pneg %p209
        %p319 = pneg %p206
        %s320 = sand.u32 %s196, 1
        %s321 = scalar_lea.sflag [#allocation5], %s320
        %s322 = sand.u32 %s196, 1
        %s323 = smul.addr %s322, 64
        %s324 = scalar_lea.vmem [#allocation4], %s323
        %p325 = pneg %p235
        %p326 = pneg %p232
        %p327 = scmp.lt.s32.totalorder %s26, 1
        %s328 = scalar_select %p327, %s26, 1
        %s329 = smul.addr %s328, 4
        %s330 = smul.addr %s329, 8
        %s331 = scalar_lea.vmem %s8, %s330
        %p332 = scmp.lt.s32.totalorder %s26, 1
        %s333 = scalar_select %p332, %s26, 1
        %s334 = smul.addr %s333, 8
        %s335 = smul.addr %s334, 8
        %s336 = scalar_lea.vmem %s0, %s335
        %p337 = scmp.lt.s32.totalorder %s26, 1
        %s338 = scalar_select %p337, %s26, 1
        %s339 = smul.addr %s338, 8
        %s340 = smul.addr %s339, 8
        %s341 = scalar_lea.vmem %s1, %s340
        %p342 = scmp.lt.s32.totalorder %s26, 1
        %s343 = scalar_select %p342, %s26, 1
        %s344 = smul.addr %s343, 4
        %s345 = smul.addr %s344, 8
        %s346 = scalar_lea.vmem %s8, %s345
        %v349 = vld [vmem:[%s3] sm:$0xff]
        %v350 = vld [vmem:[%s3 + $0x8] sm:$0xff]
        %v351 = vld [vmem:[%s3 + $0x10] sm:$0xff]
        %v352 = vld [vmem:[%s3 + $0x18] sm:$0xff]
        %v353 = vld [vmem:[%s3 + $0x20] sm:$0xff]
        %v354 = vld [vmem:[%s3 + $0x28] sm:$0xff]
        %v355 = vld [vmem:[%s3 + $0x30] sm:$0xff]
        %v356 = vld [vmem:[%s3 + $0x38] sm:$0xff]
        %v357 = vld [vmem:[%s336] sm:$0xff]
        %v358 = vld [vmem:[%s336 + $0x10] sm:$0xff]
        %v359 = vld [vmem:[%s336 + $0x20] sm:$0xff]
        %v360 = vld [vmem:[%s336 + $0x30] sm:$0xff]
        %v361 = vld [vmem:[%s2] sm:$0xf]
        %v362 = vld [vmem:[%s2 + $0x4] sm:$0xf]
        %v363 = vld [vmem:[%s2 + $0x8] sm:$0xf]
        %v364 = vld [vmem:[%s2 + $0xc] sm:$0xf]
        %v365 = vld [vmem:[%s2 + $0x10] sm:$0xf]
        %v366 = vld [vmem:[%s2 + $0x14] sm:$0xf]
        %v367 = vld [vmem:[%s2 + $0x18] sm:$0xf]
        %v368 = vld [vmem:[%s2 + $0x1c] sm:$0xf]
        %v369 = vpack.c.bf16 %v358, %v357
        %v370 = vpack.c.bf16 %v360, %v359
        %v379 = vunpack.c.l.b16 %v361
        %v380 = vunpack.c.l.b16 %v362
        %v381 = vunpack.c.l.b16 %v363
        %v382 = vunpack.c.l.b16 %v364
        %v383 = vunpack.c.l.b16 %v365
        %v384 = vunpack.c.l.b16 %v366
        %v385 = vunpack.c.l.b16 %v367
        %v386 = vunpack.c.l.b16 %v368
        %v387 = vpack.c.b16 %v380, %v379
        %v388 = vpack.c.b16 %v382, %v381
        %v389 = vpack.c.b16 %v384, %v383
        %v390 = vpack.c.b16 %v386, %v385
        %vm391 = vcmask 261120
        %v393 = vsel %vm391, %v387, 0
        %v396 = vsel %vm391, %v388, 0
        %v399 = vsel %vm391, %v389, 0
        %v402 = vsel %vm391, %v390, 0
        %404 = vmatprep.subr.bf16.mxu0 0
        %405 = vmatpush1.bf16.msra.mxu0 %v369
        %406 = vmatprep.subr.bf16.mxu0 0
        %407 = vmatpush1.bf16.msra.mxu0 %v370
        %408 = vmatprep.subr.bf16.mxu0 0
        %409 = vmatpush1.bf16.msra.mxu0 0
        %410 = vmatprep.subr.bf16.mxu0 0
        %411 = vmatpush1.bf16.msra.mxu0 0
        %412 = vmatprep.subr.bf16.mxu0 0
        %413 = vmatpush1.bf16.msra.mxu0 0
        %414 = vmatprep.subr.bf16.mxu0 0
        %415 = vmatpush1.bf16.msra.mxu0 0
        %416 = vmatprep.subr.bf16.mxu0 0
        %417 = vmatpush1.bf16.msra.mxu0 0
        %418 = vmatprep.subr.bf16.mxu0 0
        %419 = vmatpush1.bf16.msra.mxu0 0
        %420 = vmatprep.subr.bf16.mxu0 0
        %421 = vmatpush1.bf16.msra.mxu0 0
        %422 = vmatprep.subr.bf16.mxu0 0
        %423 = vmatpush1.bf16.msra.mxu0 0
        %424 = vmatprep.subr.bf16.mxu0 0
        %425 = vmatpush1.bf16.msra.mxu0 0
        %426 = vmatprep.subr.bf16.mxu0 0
        %427 = vmatpush1.bf16.msra.mxu0 0
        %428 = vmatprep.subr.bf16.mxu0 0
        %429 = vmatpush1.bf16.msra.mxu0 0
        %430 = vmatprep.subr.bf16.mxu0 0
        %431 = vmatpush1.bf16.msra.mxu0 0
        %432 = vmatprep.subr.bf16.mxu0 0
        %433 = vmatpush1.bf16.msra.mxu0 0
        %434 = vmatprep.subr.bf16.mxu0 0
        %435 = vmatpush1.bf16.msra.mxu0 0
        %436 = vmatprep.mubr.bf16.mxu0 0
        %437 = vmatmul.mubr.bf16.gmra.mrb[0].mxu0 %v393
        %v438 = vpop.f32.mrb[0].mxu0
        %v439 = vadd.f32 0.0, %v438
        %v440 = vpop.f32.mrb[0].mxu0
        %v441 = vpop.f32.mrb[0].mxu0
        %v442 = vadd.f32 0.0, %v441
        %v443 = vpop.f32.mrb[0].mxu0
        %444 = vmatprep.mubr.bf16.mxu0 0
        %445 = vmatmul.mubr.bf16.gmra.mrb[0].mxu0 %v396
        %v446 = vpop.f32.mrb[0].mxu0
        %v447 = vadd.f32 0.0, %v446
        %v448 = vpop.f32.mrb[0].mxu0
        %v449 = vpop.f32.mrb[0].mxu0
        %v450 = vadd.f32 0.0, %v449
        %v451 = vpop.f32.mrb[0].mxu0
        %452 = vmatprep.mubr.bf16.mxu0 0
        %453 = vmatmul.mubr.bf16.gmra.mrb[0].mxu0 %v399
        %v454 = vpop.f32.mrb[0].mxu0
        %v455 = vadd.f32 0.0, %v454
        %v456 = vpop.f32.mrb[0].mxu0
        %v457 = vpop.f32.mrb[0].mxu0
        %v458 = vadd.f32 0.0, %v457
        %v459 = vpop.f32.mrb[0].mxu0
        %460 = vmatprep.mubr.bf16.mxu0 0
        %461 = vmatmul.mubr.bf16.gmra.mrb[0].mxu0 %v402
        %v462 = vpop.f32.mrb[0].mxu0
        %v463 = vadd.f32 0.0, %v462
        %v464 = vpop.f32.mrb[0].mxu0
        %v465 = vpop.f32.mrb[0].mxu0
        %v466 = vadd.f32 0.0, %v465
        %v467 = vpop.f32.mrb[0].mxu0
        %468 = vdwg.mxu0
        %470 = vset.pattern.permute.xlu0 0
        %471 = vperm.xlu0 %470, %v349
        %v472 = vpop.permute.xlu0 %471
        %475 = vset.pattern.permute.xlu0 0
        %476 = vperm.xlu0 %475, %v350
        %v477 = vpop.permute.xlu0 %476
        %480 = vset.pattern.permute.xlu0 0
        %481 = vperm.xlu0 %480, %v351
        %v482 = vpop.permute.xlu0 %481
        %485 = vset.pattern.permute.xlu0 0
        %486 = vperm.xlu0 %485, %v352
        %v487 = vpop.permute.xlu0 %486
        %490 = vset.pattern.permute.xlu0 0
        %491 = vperm.xlu0 %490, %v353
        %v492 = vpop.permute.xlu0 %491
        %495 = vset.pattern.permute.xlu0 0
        %496 = vperm.xlu0 %495, %v354
        %v497 = vpop.permute.xlu0 %496
        %500 = vset.pattern.permute.xlu0 0
        %501 = vperm.xlu0 %500, %v355
        %v502 = vpop.permute.xlu0 %501
        %505 = vset.pattern.permute.xlu0 0
        %506 = vperm.xlu0 %505, %v356
        %v507 = vpop.permute.xlu0 %506
        %v509 = vadd.f32 %v472, %v439
        %v510 = vadd.f32 %v477, %v442
        %v511 = vadd.f32 %v482, %v447
        %v512 = vadd.f32 %v487, %v450
        %v513 = vadd.f32 %v492, %v455
        %v514 = vadd.f32 %v497, %v458
        %v515 = vadd.f32 %v502, %v463
        %v516 = vadd.f32 %v507, %v466
        %v517 = vld [vmem:[%s336] sm:$0xff]
        %v518 = vld [vmem:[%s336 + $0x8] sm:$0xff]
        %v519 = vld [vmem:[%s336 + $0x10] sm:$0xff]
        %v520 = vld [vmem:[%s336 + $0x18] sm:$0xff]
        %v521 = vld [vmem:[%s336 + $0x20] sm:$0xff]
        %v522 = vld [vmem:[%s336 + $0x28] sm:$0xff]
        %v523 = vld [vmem:[%s336 + $0x30] sm:$0xff]
        %v524 = vld [vmem:[%s336 + $0x38] sm:$0xff]
        %s525 = scalar_lea.vmem %s2, 32
        %v526 = vld [vmem:[%s525] sm:$0xf]
        %v527 = vld [vmem:[%s525 + $0x4] sm:$0xf]
        %v528 = vld [vmem:[%s525 + $0x8] sm:$0xf]
        %v529 = vld [vmem:[%s525 + $0xc] sm:$0xf]
        %v530 = vld [vmem:[%s525 + $0x10] sm:$0xf]
        %v531 = vld [vmem:[%s525 + $0x14] sm:$0xf]
        %v532 = vld [vmem:[%s525 + $0x18] sm:$0xf]
        %v533 = vld [vmem:[%s525 + $0x1c] sm:$0xf]
        %v534 = vpack.c.bf16 %v519, %v517
        %v535 = vpack.c.bf16 %v520, %v518
        %v536 = vpack.c.bf16 %v523, %v521
        %v537 = vpack.c.bf16 %v524, %v522
        %v546 = vunpack.c.l.b16 %v526
        %v547 = vunpack.c.l.b16 %v527
        %v548 = vunpack.c.l.b16 %v528
        %v549 = vunpack.c.l.b16 %v529
        %v550 = vunpack.c.l.b16 %v530
        %v551 = vunpack.c.l.b16 %v531
        %v552 = vunpack.c.l.b16 %v532
        %v553 = vunpack.c.l.b16 %v533
        %v554 = vpack.c.b16 %v547, %v546
        %v555 = vpack.c.b16 %v549, %v548
        %v556 = vpack.c.b16 %v551, %v550
        %v557 = vpack.c.b16 %v553, %v552
        %562 = vrot.lane.b32.xlu0 %v534, 127
        %v563 = vpop.permute.xlu0 %562
        %564 = vrot.lane.b32.xlu0 %v535, 127
        %v565 = vpop.permute.xlu0 %564
        %566 = vrot.lane.b32.xlu0 %v536, 127
        %v567 = vpop.permute.xlu0 %566
        %568 = vrot.lane.b32.xlu0 %v537, 127
        %v569 = vpop.permute.xlu0 %568
        %vm570 = vcmask 1039360
        %v571 = vsel %vm570, %v563, %v565
        %v572 = vsel %vm570, %v567, %v569
        %v576 = vsel %vm391, %v554, 0
        %v579 = vsel %vm391, %v555, 0
        %v582 = vsel %vm391, %v556, 0
        %v585 = vsel %vm391, %v557, 0
        %587 = vmatprep.subr.bf16.mxu0 0
        %588 = vmatpush1.bf16.msra.mxu0 %v571
        %589 = vmatprep.subr.bf16.mxu0 0
        %590 = vmatpush1.bf16.msra.mxu0 %v572
        %591 = vmatprep.subr.bf16.mxu0 0
        %592 = vmatpush1.bf16.msra.mxu0 0
        %593 = vmatprep.subr.bf16.mxu0 0
        %594 = vmatpush1.bf16.msra.mxu0 0
        %595 = vmatprep.subr.bf16.mxu0 0
        %596 = vmatpush1.bf16.msra.mxu0 0
        %597 = vmatprep.subr.bf16.mxu0 0
        %598 = vmatpush1.bf16.msra.mxu0 0
        %599 = vmatprep.subr.bf16.mxu0 0
        %600 = vmatpush1.bf16.msra.mxu0 0
        %601 = vmatprep.subr.bf16.mxu0 0
        %602 = vmatpush1.bf16.msra.mxu0 0
        %603 = vmatprep.subr.bf16.mxu0 0
        %604 = vmatpush1.bf16.msra.mxu0 0
        %605 = vmatprep.subr.bf16.mxu0 0
        %606 = vmatpush1.bf16.msra.mxu0 0
        %607 = vmatprep.subr.bf16.mxu0 0
        %608 = vmatpush1.bf16.msra.mxu0 0
        %609 = vmatprep.subr.bf16.mxu0 0
        %610 = vmatpush1.bf16.msra.mxu0 0
        %611 = vmatprep.subr.bf16.mxu0 0
        %612 = vmatpush1.bf16.msra.mxu0 0
        %613 = vmatprep.subr.bf16.mxu0 0
        %614 = vmatpush1.bf16.msra.mxu0 0
        %615 = vmatprep.subr.bf16.mxu0 0
        %616 = vmatpush1.bf16.msra.mxu0 0
        %617 = vmatprep.subr.bf16.mxu0 0
        %618 = vmatpush1.bf16.msra.mxu0 0
        %619 = vmatprep.mubr.bf16.mxu0 0
        %620 = vmatmul.mubr.bf16.gmra.mrb[0].mxu0 %v576
        %v621 = vpop.f32.mrb[0].mxu0
        %v622 = vadd.f32 0.0, %v621
        %v623 = vpop.f32.mrb[0].mxu0
        %v624 = vpop.f32.mrb[0].mxu0
        %v625 = vadd.f32 0.0, %v624
        %v626 = vpop.f32.mrb[0].mxu0
        %627 = vmatprep.mubr.bf16.mxu0 0
        %628 = vmatmul.mubr.bf16.gmra.mrb[0].mxu0 %v579
        %v629 = vpop.f32.mrb[0].mxu0
        %v630 = vadd.f32 0.0, %v629
        %v631 = vpop.f32.mrb[0].mxu0
        %v632 = vpop.f32.mrb[0].mxu0
        %v633 = vadd.f32 0.0, %v632
        %v634 = vpop.f32.mrb[0].mxu0
        %635 = vmatprep.mubr.bf16.mxu0 0
        %636 = vmatmul.mubr.bf16.gmra.mrb[0].mxu0 %v582
        %v637 = vpop.f32.mrb[0].mxu0
        %v638 = vadd.f32 0.0, %v637
        %v639 = vpop.f32.mrb[0].mxu0
        %v640 = vpop.f32.mrb[0].mxu0
        %v641 = vadd.f32 0.0, %v640
        %v642 = vpop.f32.mrb[0].mxu0
        %643 = vmatprep.mubr.bf16.mxu0 0
        %644 = vmatmul.mubr.bf16.gmra.mrb[0].mxu0 %v585
        %v645 = vpop.f32.mrb[0].mxu0
        %v646 = vadd.f32 0.0, %v645
        %v647 = vpop.f32.mrb[0].mxu0
        %v648 = vpop.f32.mrb[0].mxu0
        %v649 = vadd.f32 0.0, %v648
        %v650 = vpop.f32.mrb[0].mxu0
        %651 = vdwg.mxu0
        %v652 = vadd.f32 %v509, %v622
        %v653 = vadd.f32 %v510, %v625
        %v654 = vadd.f32 %v511, %v630
        %v655 = vadd.f32 %v512, %v633
        %v656 = vadd.f32 %v513, %v638
        %v657 = vadd.f32 %v514, %v641
        %v658 = vadd.f32 %v515, %v646
        %v659 = vadd.f32 %v516, %v649
        %v660 = vpack.c.bf16 %v653, %v652
        %v661 = vpack.c.bf16 %v655, %v654
        %v662 = vpack.c.bf16 %v657, %v656
        %v663 = vpack.c.bf16 %v659, %v658
        %v664 = vtanh.bf16.pop %v660
        %v665 = vtanh.bf16.pop %v661
        %v666 = vxor.u32 %v662, 2147516416
        %v667 = vxor.u32 %v663, 2147516416
        %v669 = vmul.bf16 %v666, 1069105081
        %v670 = vpow.bf16.pop %v669
        %v672 = vmul.bf16 %v667, 1069105081
        %v673 = vpow.bf16.pop %v672
        %v674 = vadd.bf16 %v670, 1065369472
        %v675 = vadd.bf16 %v673, 1065369472
        %v676 = vrcp.bf16.pop %v674
        %v677 = vmul.bf16 1065369472, %v676
        %v678 = vrcp.bf16.pop %v675
        %v679 = vmul.bf16 1065369472, %v678
        %v680 = vmul.bf16 %v664, %v677
        %v681 = vmul.bf16 %v665, %v679
        %v682 = vld [vmem:[%s4] sm:$0xf]
        %v683 = vld [vmem:[%s4 + $0x4] sm:$0xf]
        %v684 = vld [vmem:[%s4 + $0x8] sm:$0xf]
        %v685 = vld [vmem:[%s4 + $0xc] sm:$0xf]
        %v686 = vld [vmem:[%s4 + $0x10] sm:$0xf]
        %v687 = vld [vmem:[%s4 + $0x14] sm:$0xf]
        %v688 = vld [vmem:[%s4 + $0x18] sm:$0xf]
        %v689 = vld [vmem:[%s4 + $0x1c] sm:$0xf]
        %v690 = vld [vmem:[%s5] sm:$0xff]
        %v691 = vld [vmem:[%s5 + $0x8] sm:$0xff]
        %v692 = vld [vmem:[%s5 + $0x10] sm:$0xff]
        %v693 = vld [vmem:[%s5 + $0x18] sm:$0xff]
        %v694 = vld [vmem:[%s5 + $0x20] sm:$0xff]
        %v695 = vld [vmem:[%s5 + $0x28] sm:$0xff]
        %v696 = vld [vmem:[%s5 + $0x30] sm:$0xff]
        %v697 = vld [vmem:[%s5 + $0x38] sm:$0xff]
        %699 = vset.pattern.permute.xlu0 0
        %700 = vperm.xlu0 %699, %v690
        %v701 = vpop.permute.xlu0 %700
        %704 = vset.pattern.permute.xlu0 0
        %705 = vperm.xlu0 %704, %v691
        %v706 = vpop.permute.xlu0 %705
        %709 = vset.pattern.permute.xlu0 0
        %710 = vperm.xlu0 %709, %v692
        %v711 = vpop.permute.xlu0 %710
        %714 = vset.pattern.permute.xlu0 0
        %715 = vperm.xlu0 %714, %v693
        %v716 = vpop.permute.xlu0 %715
        %719 = vset.pattern.permute.xlu0 0
        %720 = vperm.xlu0 %719, %v694
        %v721 = vpop.permute.xlu0 %720
        %724 = vset.pattern.permute.xlu0 0
        %725 = vperm.xlu0 %724, %v695
        %v726 = vpop.permute.xlu0 %725
        %729 = vset.pattern.permute.xlu0 0
        %730 = vperm.xlu0 %729, %v696
        %v731 = vpop.permute.xlu0 %730
        %734 = vset.pattern.permute.xlu0 0
        %735 = vperm.xlu0 %734, %v697
        %v736 = vpop.permute.xlu0 %735
        %v746 = vunpack.c.l.b16 %v682
        %v747 = vunpack.c.l.b16 %v683
        %v748 = vunpack.c.l.b16 %v684
        %v749 = vunpack.c.l.b16 %v685
        %v750 = vunpack.c.l.b16 %v686
        %v751 = vunpack.c.l.b16 %v687
        %v752 = vunpack.c.l.b16 %v688
        %v753 = vunpack.c.l.b16 %v689
        %v754 = vpack.c.b16 %v747, %v746
        %v755 = vpack.c.b16 %v749, %v748
        %v756 = vpack.c.b16 %v751, %v750
        %v757 = vpack.c.b16 %v753, %v752
        %v759 = vsel %vm391, %v754, 0
        %v762 = vsel %vm391, %v755, 0
        %v765 = vsel %vm391, %v756, 0
        %v768 = vsel %vm391, %v757, 0
        %770 = vmatprep.subr.bf16.mxu0 0
        %771 = vmatpush1.bf16.msra.mxu0 %v680
        %772 = vmatprep.subr.bf16.mxu0 0
        %773 = vmatpush1.bf16.msra.mxu0 %v681
        %774 = vmatprep.subr.bf16.mxu0 0
        %775 = vmatpush1.bf16.msra.mxu0 0
        %776 = vmatprep.subr.bf16.mxu0 0
        %777 = vmatpush1.bf16.msra.mxu0 0
        %778 = vmatprep.subr.bf16.mxu0 0
        %779 = vmatpush1.bf16.msra.mxu0 0
        %780 = vmatprep.subr.bf16.mxu0 0
        %781 = vmatpush1.bf16.msra.mxu0 0
        %782 = vmatprep.subr.bf16.mxu0 0
        %783 = vmatpush1.bf16.msra.mxu0 0
        %784 = vmatprep.subr.bf16.mxu0 0
        %785 = vmatpush1.bf16.msra.mxu0 0
        %786 = vmatprep.subr.bf16.mxu0 0
        %787 = vmatpush1.bf16.msra.mxu0 0
        %788 = vmatprep.subr.bf16.mxu0 0
        %789 = vmatpush1.bf16.msra.mxu0 0
        %790 = vmatprep.subr.bf16.mxu0 0
        %791 = vmatpush1.bf16.msra.mxu0 0
        %792 = vmatprep.subr.bf16.mxu0 0
        %793 = vmatpush1.bf16.msra.mxu0 0
        %794 = vmatprep.subr.bf16.mxu0 0
        %795 = vmatpush1.bf16.msra.mxu0 0
        %796 = vmatprep.subr.bf16.mxu0 0
        %797 = vmatpush1.bf16.msra.mxu0 0
        %798 = vmatprep.subr.bf16.mxu0 0
        %799 = vmatpush1.bf16.msra.mxu0 0
        %800 = vmatprep.subr.bf16.mxu0 0
        %801 = vmatpush1.bf16.msra.mxu0 0
        %802 = vmatprep.mubr.bf16.mxu0 0
        %803 = vmatmul.mubr.bf16.gmra.mrb[0].mxu0 %v759
        %v804 = vpop.f32.mrb[0].mxu0
        %v805 = vadd.f32 %v701, %v804
        %v806 = vpop.f32.mrb[0].mxu0
        %v807 = vpop.f32.mrb[0].mxu0
        %v808 = vadd.f32 %v706, %v807
        %v809 = vpop.f32.mrb[0].mxu0
        %810 = vmatprep.mubr.bf16.mxu0 0
        %811 = vmatmul.mubr.bf16.gmra.mrb[0].mxu0 %v762
        %v812 = vpop.f32.mrb[0].mxu0
        %v813 = vadd.f32 %v711, %v812
        %v814 = vpop.f32.mrb[0].mxu0
        %v815 = vpop.f32.mrb[0].mxu0
        %v816 = vadd.f32 %v716, %v815
        %v817 = vpop.f32.mrb[0].mxu0
        %818 = vmatprep.mubr.bf16.mxu0 0
        %819 = vmatmul.mubr.bf16.gmra.mrb[0].mxu0 %v765
        %v820 = vpop.f32.mrb[0].mxu0
        %v821 = vadd.f32 %v721, %v820
        %v822 = vpop.f32.mrb[0].mxu0
        %v823 = vpop.f32.mrb[0].mxu0
        %v824 = vadd.f32 %v726, %v823
        %v825 = vpop.f32.mrb[0].mxu0
        %826 = vmatprep.mubr.bf16.mxu0 0
        %827 = vmatmul.mubr.bf16.gmra.mrb[0].mxu0 %v768
        %v828 = vpop.f32.mrb[0].mxu0
        %v829 = vadd.f32 %v731, %v828
        %v830 = vpop.f32.mrb[0].mxu0
        %v831 = vpop.f32.mrb[0].mxu0
        %v832 = vadd.f32 %v736, %v831
        %v833 = vpop.f32.mrb[0].mxu0
        %834 = vdwg.mxu0
        %v835 = vld [vmem:[%s341] sm:$0xff]
        %v836 = vld [vmem:[%s341 + $0x8] sm:$0xff]
        %v837 = vld [vmem:[%s341 + $0x10] sm:$0xff]
        %v838 = vld [vmem:[%s341 + $0x18] sm:$0xff]
        %v839 = vld [vmem:[%s341 + $0x20] sm:$0xff]
        %v840 = vld [vmem:[%s341 + $0x28] sm:$0xff]
        %v841 = vld [vmem:[%s341 + $0x30] sm:$0xff]
        %v842 = vld [vmem:[%s341 + $0x38] sm:$0xff]
        %v843 = vadd.f32 %v805, %v835
        %v844 = vadd.f32 %v808, %v836
        %v845 = vadd.f32 %v813, %v837
        %v846 = vadd.f32 %v816, %v838
        %v847 = vadd.f32 %v821, %v839
        %v848 = vadd.f32 %v824, %v840
        %v849 = vadd.f32 %v829, %v841
        %v850 = vadd.f32 %v832, %v842
        %851 = vst [vmem:[%s324] sm:$0xff] %v843
        %852 = vst [vmem:[%s324 + $0x8] sm:$0xff] %v844
        %853 = vst [vmem:[%s324 + $0x10] sm:$0xff] %v845
        %854 = vst [vmem:[%s324 + $0x18] sm:$0xff] %v846
        %855 = vst [vmem:[%s324 + $0x20] sm:$0xff] %v847
        %856 = vst [vmem:[%s324 + $0x28] sm:$0xff] %v848
        %857 = vst [vmem:[%s324 + $0x30] sm:$0xff] %v849
        %858 = vst [vmem:[%s324 + $0x38] sm:$0xff] %v850
        %v859 = vunpack.c.l.bf16 %v680
        %v860 = vunpack.c.h.bf16 %v680
        %v861 = vunpack.c.l.bf16 %v681
        %v862 = vunpack.c.h.bf16 %v681
        %871 = vrot.lane.b32.xlu0 %v517, 127
        %v872 = vpop.permute.xlu0 %871
        %873 = vrot.lane.b32.xlu0 %v518, 127
        %v874 = vpop.permute.xlu0 %873
        %875 = vrot.lane.b32.xlu0 %v519, 127
        %v876 = vpop.permute.xlu0 %875
        %877 = vrot.lane.b32.xlu0 %v520, 127
        %v878 = vpop.permute.xlu0 %877
        %879 = vrot.lane.b32.xlu0 %v521, 127
        %v880 = vpop.permute.xlu0 %879
        %881 = vrot.lane.b32.xlu0 %v522, 127
        %v882 = vpop.permute.xlu0 %881
        %883 = vrot.lane.b32.xlu0 %v523, 127
        %v884 = vpop.permute.xlu0 %883
        %885 = vrot.lane.b32.xlu0 %v524, 127
        %v886 = vpop.permute.xlu0 %885
        %vm887 = vcmask 1039360
        %v888 = vsel %vm887, %v872, %v874
        %v889 = vsel %vm887, %v876, %v878
        %v890 = vsel %vm887, %v880, %v882
        %v891 = vsel %vm887, %v884, %v886
        %v896 = vadd.f32 %v859, %v888
        %v897 = vadd.f32 %v860, %v889
        %v898 = vadd.f32 %v861, %v890
        %v899 = vadd.f32 %v862, %v891
        %v900 = vpack.c.bf16 %v897, %v896
        %v901 = vpack.c.bf16 %v899, %v898
        %v904 = vunpack.c.l.b16 %v900
        %v905 = vunpack.c.h.b16 %v900
        %v906 = vunpack.c.l.b16 %v901
        %v907 = vunpack.c.h.b16 %v901
        %v908 = vpack.c.b16 %v904, %v904
        %v909 = vpack.c.b16 %v905, %v905
        %v910 = vpack.c.b16 %v906, %v906
        %v911 = vpack.c.b16 %v907, %v907
        %916 = vst [vmem:[%s317] sm:$0xf] %v908
        %917 = vst [vmem:[%s317 + $0x4] sm:$0xf] %v909
        %918 = vst [vmem:[%s317 + $0x8] sm:$0xf] %v910
        %919 = vst [vmem:[%s317 + $0xc] sm:$0xf] %v911
        %920 = vadd.xlane.f32.xlu0 %v896
        %v921 = vpop.xlane.xlu0 %920
        %922 = vadd.xlane.f32.xlu0 %v897
        %v923 = vpop.xlane.xlu0 %922
        %924 = vadd.xlane.f32.xlu0 %v898
        %v925 = vpop.xlane.xlu0 %924
        %926 = vadd.xlane.f32.xlu0 %v899
        %v927 = vpop.xlane.xlu0 %926
        %v928 = vmul.f32 %v896, %v896
        %v929 = vmul.f32 %v897, %v897
        %v930 = vmul.f32 %v898, %v898
        %v931 = vmul.f32 %v899, %v899
        %932 = vadd.xlane.f32.xlu0 %v928
        %v933 = vpop.xlane.xlu0 %932
        %934 = vadd.xlane.f32.xlu0 %v929
        %v935 = vpop.xlane.xlu0 %934
        %936 = vadd.xlane.f32.xlu0 %v930
        %v937 = vpop.xlane.xlu0 %936
        %938 = vadd.xlane.f32.xlu0 %v931
        %v939 = vpop.xlane.xlu0 %938
        %vm940 = vcmask 7168
        %v941 = vsel %vm940, %v921, %v933
        %v942 = vsel %vm940, %v923, %v935
        %v943 = vsel %vm940, %v925, %v937
        %v944 = vsel %vm940, %v927, %v939
        %vm945 = vcmask 15360
        %946 = vst.msk [vmem:[%s346] sm:$0xff] %vm945, %v941
        %947 = vst.msk [vmem:[%s346 + $0x8] sm:$0xff] %vm945, %v942
        %948 = vst.msk [vmem:[%s346 + $0x10] sm:$0xff] %vm945, %v943
        %949 = vst.msk [vmem:[%s346 + $0x18] sm:$0xff] %vm945, %v944
        %s950 = sand.u32 %s170, 1
        %s951 = scalar_lea.sflag [#allocation3], %s950
        %s952 = sand.u32 %s170, 1
        %s953 = smul.addr %s952, 16
        %s954 = scalar_lea.vmem [#allocation2], %s953
        %s955 = sand.u32 %s196, 1
        %s956 = scalar_lea.sflag [#allocation5], %s955
        %s957 = sand.u32 %s196, 1
        %s958 = smul.addr %s957, 64
        %s959 = scalar_lea.vmem [#allocation4], %s958
        %p960 = scmp.lt.s32.totalorder %s26, 1
        %s961 = scalar_select %p960, %s26, 1
        %s962 = smul.addr %s961, 4
        %s963 = smul.addr %s962, 8
        %s964 = scalar_lea.vmem %s8, %s963
        // Predicated region
        $region45: #{tpu_custom_call.1} parent=43 // pred_check
          %p965 = pneg %p180
        $region46: #{tpu_custom_call.1} parent=43 // pred_check_branch
          %967 = sbr.rel (%p965) target = $region48
        $region47: #{tpu_custom_call.1} parent=43 // pred_region
          %s969 = ssub.s32 256, 256
          %970 = vsyncadd %s951, %s969
          %s971 = smul.addr %s26, 4
          %s972 = smul.addr %s971, 64
          %s973 = scalar_lea.hbm %s6, %s972
          %s974 = sshll.u32 %s954, 4
          %s975 = int_to_ptr.vmem [resolvable:$true] %s974
          %980 = dma.vmem_to_hbm [thread:$0]  %s975, 256, %s973, %s951, 64, 64, 4
        $region48: #{tpu_custom_call.1} parent=43 // pred_fallthru
          _
        // Predicated region
        $region49: #{tpu_custom_call.1} parent=43 // pred_check
          %p981 = pneg %p206
        $region50: #{tpu_custom_call.1} parent=43 // pred_check_branch
          %983 = sbr.rel (%p981) target = $region52
        $region51: #{tpu_custom_call.1} parent=43 // pred_region
          %s985 = ssub.s32 1024, 1024
          %986 = vsyncadd %s956, %s985
          %s987 = smul.addr %s26, 8
          %s988 = smul.addr %s987, 128
          %s989 = scalar_lea.hbm %s7, %s988
          %s990 = sshll.u32 %s959, 4
          %s991 = int_to_ptr.vmem [resolvable:$true] %s990
          %996 = dma.vmem_to_hbm [thread:$0]  %s991, 1024, %s989, %s956, 128, 128, 8
        $region52: #{tpu_custom_call.1} parent=43 // pred_fallthru
          _
        // Predicated region
        $region53: #{tpu_custom_call.1} parent=43 // pred_check
          %p997 = pneg %p232
        $region54: #{tpu_custom_call.1} parent=43 // pred_check_branch
          %999 = sbr.rel (%p997) target = $region56
        $region55: #{tpu_custom_call.1} parent=43 // pred_region
          _
        $region56: #{tpu_custom_call.1} parent=43 // pred_fallthru
          _
      $region44: #{tpu_custom_call.1} parent=5 // pred_fallthru
        _
      %p1000 = scmp.le.s32.totalorder 2, %s21
      // Predicated region
      $region57: #{tpu_custom_call.1} parent=5 // pred_check
        %p1001 = pneg %p1000
      $region58: #{tpu_custom_call.1} parent=5 // pred_check_branch
        %1003 = sbr.rel (%p1001) target = $region60
      $region59: #{tpu_custom_call.1} parent=5 // pred_region
        %s1004 = ssub.s32 %s21, 2
        // Predicated region
        $region61: #{tpu_custom_call.1} parent=59 // pred_check
          %p1005 = pneg %p186
        $region62: #{tpu_custom_call.1} parent=59 // pred_check_branch
          %1007 = sbr.rel (%p1005) target = $region64
        $region63: #{tpu_custom_call.1} parent=59 // pred_region
          %s1008 = sand.u32 %s171, 1
          %s1009 = scalar_lea.sflag [#allocation3], %s1008
          %s1010 = sand.u32 %s171, 1
          %s1011 = smul.addr %s1010, 16
          %s1012 = scalar_lea.vmem [#allocation2], %s1011
          %1013 = dma.done %s1009, 256
        $region64: #{tpu_custom_call.1} parent=59 // pred_fallthru
          _
        // Predicated region
        $region65: #{tpu_custom_call.1} parent=59 // pred_check
          %p1014 = pneg %p212
        $region66: #{tpu_custom_call.1} parent=59 // pred_check_branch
          %1016 = sbr.rel (%p1014) target = $region68
        $region67: #{tpu_custom_call.1} parent=59 // pred_region
          %s1017 = sand.u32 %s197, 1
          %s1018 = scalar_lea.sflag [#allocation5], %s1017
          %s1019 = sand.u32 %s197, 1
          %s1020 = smul.addr %s1019, 64
          %s1021 = scalar_lea.vmem [#allocation4], %s1020
          %1022 = dma.done %s1018, 1024
        $region68: #{tpu_custom_call.1} parent=59 // pred_fallthru
          _
        // Predicated region
        $region69: #{tpu_custom_call.1} parent=59 // pred_check
          %p1023 = pneg %p238
        $region70: #{tpu_custom_call.1} parent=59 // pred_check_branch
          %1025 = sbr.rel (%p1023) target = $region72
        $region71: #{tpu_custom_call.1} parent=59 // pred_region
          %p1026 = scmp.lt.s32.totalorder %s27, 1
          %s1027 = scalar_select %p1026, %s27, 1
          %s1028 = smul.addr %s1027, 4
          %s1029 = smul.addr %s1028, 8
          %s1030 = scalar_lea.vmem %s8, %s1029
        $region72: #{tpu_custom_call.1} parent=59 // pred_fallthru
          _
      $region60: #{tpu_custom_call.1} parent=5 // pred_fallthru
        _
    $region6: #{tpu_custom_call.1} parent=1 // loop_footer
      %s25 = sadd.s32 1, %s21
    $region7: #{tpu_custom_call.1} parent=1 // loop_footer_branch
      %20 = sbr.rel target = $region3
    $region8: #{tpu_custom_call.1} parent=1 // loop_exit
      _
    %1031 = vsyncpa [#allocation3], 1
    %s1032 = scalar_lea.sflag [#allocation3], 1
    %1033 = vsyncpa %s1032, 1
    %1034 = vsyncpa [#allocation5], 1
    %s1035 = scalar_lea.sflag [#allocation5], 1
    %1036 = vsyncpa %s1035, 1

</llo_original>
